<compile_context>
chip_gen: v5e
topology: v5e:2x2
jax: 0.10.0
libtpu: 0.0.40
codegen_flags: <defaults>
</compile_context>

<pallas_src>
import jax
import jax.numpy as jnp
from jax.experimental import pallas as pl
from jax.experimental.pallas import tpu as pltpu


def _round_up(x, m):
    return ((x + m - 1) // m) * m


def next_para_pred_kernel(x_ref, w1_ref, b1_ref, wd_ref, bd_ref, o_ref):
    # Dropout layers are identity in eval mode.
    # linear1: (TILE_B, D) @ (D, H) + (1, H); MXU accumulates in f32.
    h = jnp.dot(x_ref[...], w1_ref[...],
                preferred_element_type=jnp.float32) + b1_ref[...]

    # exact GELU: 0.5 * x * (1 + erf(x / sqrt(2)))  (nn.GELU default)
    inv_sqrt2 = jnp.float32(0.7071067811865476)
    h = 0.5 * h * (1.0 + jax.lax.erf(h * inv_sqrt2))

    # LayerNorm over the hidden dim (eps = 1e-5); the affine (gamma, beta) is
    # folded into wd/bd in the wrapper, so only normalization happens here.
    mean = jnp.mean(h, axis=-1, keepdims=True)
    centered = h - mean
    var = jnp.mean(centered * centered, axis=-1, keepdims=True)
    n = centered * jax.lax.rsqrt(var + 1e-5)

    # 2-class (Linear(H,2) + Softmax) closed form:
    #   logit_diff = n @ wd + bd ;  p0 = sigmoid(logit_diff) ;  p1 = 1 - p0
    diff = jnp.sum(n * wd_ref[...], axis=-1, keepdims=True) + bd_ref[...]
    p0 = 1.0 / (1.0 + jnp.exp(-diff))          # (TILE_B, 1)
    p1 = 1.0 - p0

    # Lane-dense store: (TILE_B, 128) block; p0 -> lane 0, p1 -> lane 1.
    lane = jax.lax.broadcasted_iota(jnp.int32, o_ref.shape, 1)
    o_ref[...] = jnp.where(lane == 0, p0, jnp.where(lane == 1, p1, 0.0))


def next_para_pred(x, w1, b1, gamma, beta, w2, b2, *, tile_b=256):
    """x: (B, D); w1: (D, H); b1/gamma/beta: (1, H); w2: (H, 2); b2: (1, 2)."""
    B, D = x.shape
    H = w1.shape[1]

    # ---- Fold LayerNorm affine + 2-class softmax into sigmoid-of-difference.
    w2f = w2.astype(jnp.float32)
    wdiff = w2f[:, 0] - w2f[:, 1]                                    # (H,)
    wd = (gamma.reshape(-1).astype(jnp.float32) * wdiff).reshape(1, H)
    bd = (jnp.sum(beta.reshape(-1).astype(jnp.float32) * wdiff)
          + (b2.reshape(-1)[0] - b2.reshape(-1)[1])).reshape(1, 1)

    # ---- Tile the batch (multiple of 8 sublanes); pad B if needed.
    tile_b = max(8, min(tile_b, _round_up(B, 8)))
    b_pad = _round_up(B, tile_b)
    if b_pad != B:
        x = jnp.pad(x, ((0, b_pad - B), (0, 0)))
    grid = (b_pad // tile_b,)

    out_padded = pl.pallas_call(
        next_para_pred_kernel,
        out_shape=jax.ShapeDtypeStruct((b_pad, 128), jnp.float32),
        grid=grid,
        in_specs=[
            pl.BlockSpec((tile_b, D), lambda i: (i, 0)),   # x streams per tile
            pl.BlockSpec((D, H), lambda i: (0, 0)),        # w1 resident
            pl.BlockSpec((1, H), lambda i: (0, 0)),        # b1 resident
            pl.BlockSpec((1, H), lambda i: (0, 0)),        # wd resident
            pl.BlockSpec((1, 1), lambda i: (0, 0)),        # bd resident
        ],
        out_specs=pl.BlockSpec((tile_b, 128), lambda i: (i, 0)),
        compiler_params=pltpu.CompilerParams(
            dimension_semantics=("parallel",)),            # megacore on v7x
    )(x, w1, b1, wd, bd)

    # Slice the two useful (lane-dense-stored) columns and drop batch padding.
    return out_padded[:B, :2]


def reference(x, w1, b1, gamma, beta, w2, b2):
    h = x @ w1 + b1
    h = 0.5 * h * (1.0 + jax.lax.erf(h / jnp.sqrt(2.0)))
    mean = jnp.mean(h, axis=-1, keepdims=True)
    var = jnp.mean((h - mean) ** 2, axis=-1, keepdims=True)
    h = (h - mean) / jnp.sqrt(var + 1e-5) * gamma + beta
    logits = h @ w2 + b2
    return jax.nn.softmax(logits, axis=-1)


if __name__ == "__main__":
    B, D = 8, 32                      # batch, embedding_token_dim
    H = D // 2                        # hidden dim of the head

    key = jax.random.PRNGKey(0)
    kx, kw1, kb1, kw2, kb2 = jax.random.split(key, 5)

    x = jax.random.normal(kx, (B, D), dtype=jnp.float32)

    # Deterministic parameter init (shapes per nn.Linear / nn.LayerNorm).
    # Linear weights stored pre-transposed as (in, out) for x @ w.
    bound1 = 1.0 / jnp.sqrt(D)
    w1 = jax.random.uniform(kw1, (D, H), jnp.float32, -bound1, bound1)
    b1 = jax.random.uniform(kb1, (1, H), jnp.float32, -bound1, bound1)
    gamma = jnp.ones((1, H), jnp.float32)     # LayerNorm default weight
    beta = jnp.zeros((1, H), jnp.float32)     # LayerNorm default bias
    bound2 = 1.0 / jnp.sqrt(H)
    w2 = jax.random.uniform(kw2, (H, 2), jnp.float32, -bound2, bound2)
    b2 = jax.random.uniform(kb2, (1, 2), jnp.float32, -bound2, bound2)

    out = next_para_pred(x, w1, b1, gamma, beta, w2, b2)
    out = jax.block_until_ready(out)

    ref = reference(x, w1, b1, gamma, beta, w2, b2)
    assert out.shape == (B, 2)
    assert jnp.allclose(out, ref, atol=1e-5, rtol=1e-5), "mismatch vs reference"
    assert jnp.allclose(jnp.sum(out, axis=-1), 1.0, atol=1e-5)

    print("KERNEL_OK")
</pallas_src>

<mosaic_0001>
module attributes {stable_mosaic.version = 11 : i64} {
  func.func @next_para_pred_kernel(%arg0: i32, %arg1: memref<8x32xf32, #tpu.memory_space<vmem>>, %arg2: memref<32x16xf32, #tpu.memory_space<vmem>>, %arg3: memref<1x16xf32, #tpu.memory_space<vmem>>, %arg4: memref<1x16xf32, #tpu.memory_space<vmem>>, %arg5: memref<1x1xf32, #tpu.memory_space<vmem>>, %arg6: memref<8x128xf32, #tpu.memory_space<vmem>>) attributes {dimension_semantics = [#tpu.dimension_semantics<parallel>], iteration_bounds = array<i64: 1>, scalar_prefetch = 0 : i64, scratch_operands = 0 : i64, tpu.core_type = #tpu.core_type<tc>, window_params = [{transform_indices = @transform_0, window_bounds = array<i64: 8, 32>}, {pipeline_mode = #tpu.pipeline_mode<synchronous>, transform_indices = @transform_1, window_bounds = array<i64: 32, 16>}, {pipeline_mode = #tpu.pipeline_mode<synchronous>, transform_indices = @transform_2, window_bounds = array<i64: 1, 16>}, {pipeline_mode = #tpu.pipeline_mode<synchronous>, transform_indices = @transform_3, window_bounds = array<i64: 1, 16>}, {pipeline_mode = #tpu.pipeline_mode<synchronous>, transform_indices = @transform_4, window_bounds = array<i64: 1, 1>}, {transform_indices = @transform_5, window_bounds = array<i64: 8, 128>}]} {
    %c0 = arith.constant 0 : index
    %c0_0 = arith.constant 0 : index
    %0 = vector.load %arg1[%c0, %c0_0] : memref<8x32xf32, #tpu.memory_space<vmem>>, vector<8x32xf32>
    %c0_1 = arith.constant 0 : index
    %c0_2 = arith.constant 0 : index
    %1 = vector.load %arg2[%c0_1, %c0_2] : memref<32x16xf32, #tpu.memory_space<vmem>>, vector<32x16xf32>
    %cst = arith.constant dense<0.000000e+00> : vector<8x16xf32>
    %2 = tpu.matmul %0, %1, %cst {dimension_numbers = #tpu.dot_dimension_numbers<[1], [0], [0], [1], [0, 0, 1, 1], [], []>} : vector<8x32xf32>, vector<32x16xf32>, vector<8x16xf32> -> vector<8x16xf32>
    %c0_3 = arith.constant 0 : index
    %c0_4 = arith.constant 0 : index
    %3 = vector.load %arg3[%c0_3, %c0_4] : memref<1x16xf32, #tpu.memory_space<vmem>>, vector<1x16xf32>
    %4 = vector.broadcast %3 : vector<1x16xf32> to vector<8x16xf32>
    %5 = arith.addf %2, %4 : vector<8x16xf32>
    %cst_5 = arith.constant 5.000000e-01 : f32
    %6 = vector.broadcast %cst_5 : f32 to vector<8x16xf32>
    %7 = arith.mulf %6, %5 : vector<8x16xf32>
    %cst_6 = arith.constant 0.707106769 : f32
    %8 = vector.broadcast %cst_6 : f32 to vector<8x16xf32>
    %9 = arith.mulf %5, %8 : vector<8x16xf32>
    %10 = math.erf %9 : vector<8x16xf32>
    %cst_7 = arith.constant 1.000000e+00 : f32
    %11 = vector.broadcast %cst_7 : f32 to vector<8x16xf32>
    %12 = arith.addf %11, %10 : vector<8x16xf32>
    %13 = arith.mulf %7, %12 : vector<8x16xf32>
    %cst_8 = arith.constant dense<0.000000e+00> : vector<8xf32>
    %14 = vector.multi_reduction <add>, %13, %cst_8 [1] : vector<8x16xf32> to vector<8xf32>
    %15 = vector.shape_cast %14 : vector<8xf32> to vector<8x1xf32>
    %cst_9 = arith.constant 1.600000e+01 : f32
    %16 = vector.broadcast %cst_9 : f32 to vector<8x1xf32>
    %17 = arith.divf %15, %16 : vector<8x1xf32>
    %18 = vector.broadcast %17 : vector<8x1xf32> to vector<8x16xf32>
    %19 = arith.subf %13, %18 : vector<8x16xf32>
    %20 = arith.mulf %19, %19 : vector<8x16xf32>
    %cst_10 = arith.constant dense<0.000000e+00> : vector<8xf32>
    %21 = vector.multi_reduction <add>, %20, %cst_10 [1] : vector<8x16xf32> to vector<8xf32>
    %22 = vector.shape_cast %21 : vector<8xf32> to vector<8x1xf32>
    %cst_11 = arith.constant 1.600000e+01 : f32
    %23 = vector.broadcast %cst_11 : f32 to vector<8x1xf32>
    %24 = arith.divf %22, %23 : vector<8x1xf32>
    %cst_12 = arith.constant 9.99999974E-6 : f32
    %25 = vector.broadcast %cst_12 : f32 to vector<8x1xf32>
    %26 = arith.addf %24, %25 : vector<8x1xf32>
    %27 = math.rsqrt %26 : vector<8x1xf32>
    %28 = vector.broadcast %27 : vector<8x1xf32> to vector<8x16xf32>
    %29 = arith.mulf %19, %28 : vector<8x16xf32>
    %c0_13 = arith.constant 0 : index
    %c0_14 = arith.constant 0 : index
    %30 = vector.load %arg4[%c0_13, %c0_14] : memref<1x16xf32, #tpu.memory_space<vmem>>, vector<1x16xf32>
    %31 = vector.broadcast %30 : vector<1x16xf32> to vector<8x16xf32>
    %32 = arith.mulf %29, %31 : vector<8x16xf32>
    %cst_15 = arith.constant dense<0.000000e+00> : vector<8xf32>
    %33 = vector.multi_reduction <add>, %32, %cst_15 [1] : vector<8x16xf32> to vector<8xf32>
    %34 = vector.shape_cast %33 : vector<8xf32> to vector<8x1xf32>
    %c0_16 = arith.constant 0 : index
    %c0_17 = arith.constant 0 : index
    %35 = vector.load %arg5[%c0_16, %c0_17] : memref<1x1xf32, #tpu.memory_space<vmem>>, vector<1x1xf32>
    %36 = vector.broadcast %35 : vector<1x1xf32> to vector<8x1xf32>
    %37 = arith.addf %34, %36 : vector<8x1xf32>
    %cst_18 = arith.constant 0.000000e+00 : f32
    %38 = vector.broadcast %cst_18 : f32 to vector<8x1xf32>
    %39 = arith.subf %38, %37 : vector<8x1xf32>
    %40 = math.exp %39 : vector<8x1xf32>
    %cst_19 = arith.constant 1.000000e+00 : f32
    %41 = vector.broadcast %cst_19 : f32 to vector<8x1xf32>
    %42 = arith.addf %41, %40 : vector<8x1xf32>
    %cst_20 = arith.constant 1.000000e+00 : f32
    %43 = vector.broadcast %cst_20 : f32 to vector<8x1xf32>
    %44 = arith.divf %43, %42 : vector<8x1xf32>
    %cst_21 = arith.constant 1.000000e+00 : f32
    %45 = vector.broadcast %cst_21 : f32 to vector<8x1xf32>
    %46 = arith.subf %45, %44 : vector<8x1xf32>
    %47 = tpu.iota {dimensions = array<i32: 1>} : vector<8x128xi32>
    %c0_i32 = arith.constant 0 : i32
    %48 = vector.broadcast %c0_i32 : i32 to vector<8x128xi32>
    %49 = arith.cmpi eq, %47, %48 : vector<8x128xi32>
    %c1_i32 = arith.constant 1 : i32
    %50 = vector.broadcast %c1_i32 : i32 to vector<8x128xi32>
    %51 = arith.cmpi eq, %47, %50 : vector<8x128xi32>
    %cst_22 = arith.constant 0.000000e+00 : f32
    %52 = vector.shape_cast %46 : vector<8x1xf32> to vector<8x1xf32>
    %53 = vector.broadcast %52 : vector<8x1xf32> to vector<8x128xf32>
    %54 = vector.broadcast %cst_22 : f32 to vector<8x128xf32>
    %55 = arith.select %51, %53, %54 : vector<8x128xi1>, vector<8x128xf32>
    %56 = vector.shape_cast %44 : vector<8x1xf32> to vector<8x1xf32>
    %57 = vector.broadcast %56 : vector<8x1xf32> to vector<8x128xf32>
    %58 = arith.select %49, %57, %55 : vector<8x128xi1>, vector<8x128xf32>
    %c0_23 = arith.constant 0 : index
    %c0_24 = arith.constant 0 : index
    %59 = vector.load %arg6[%c0_23, %c0_24] : memref<8x128xf32, #tpu.memory_space<vmem>>, vector<8x128xf32>
    tpu.vector_store %arg6[%c0_23, %c0_24], %58 {strides = array<i32>} : memref<8x128xf32, #tpu.memory_space<vmem>>, vector<8x128xf32>,
    return
  }
  func.func @transform_0(%arg0: i32) -> (i32, i32) {
    %c0_i32 = arith.constant 0 : i32
    %c0_i32_0 = arith.constant 0 : i32
    return %arg0, %c0_i32 : i32, i32
  }
  func.func @transform_1(%arg0: i32) -> (i32, i32) {
    %c0_i32 = arith.constant 0 : i32
    %c0_i32_0 = arith.constant 0 : i32
    %c0_i32_1 = arith.constant 0 : i32
    return %c0_i32, %c0_i32_0 : i32, i32
  }
  func.func @transform_2(%arg0: i32) -> (i32, i32) {
    %c0_i32 = arith.constant 0 : i32
    %c0_i32_0 = arith.constant 0 : i32
    %c0_i32_1 = arith.constant 0 : i32
    return %c0_i32, %c0_i32_0 : i32, i32
  }
  func.func @transform_3(%arg0: i32) -> (i32, i32) {
    %c0_i32 = arith.constant 0 : i32
    %c0_i32_0 = arith.constant 0 : i32
    %c0_i32_1 = arith.constant 0 : i32
    return %c0_i32, %c0_i32_0 : i32, i32
  }
  func.func @transform_4(%arg0: i32) -> (i32, i32) {
    %c0_i32 = arith.constant 0 : i32
    %c0_i32_0 = arith.constant 0 : i32
    %c0_i32_1 = arith.constant 0 : i32
    return %c0_i32, %c0_i32_0 : i32, i32
  }
  func.func @transform_5(%arg0: i32) -> (i32, i32) {
    %c0_i32 = arith.constant 0 : i32
    %c0_i32_0 = arith.constant 0 : i32
    return %arg0, %c0_i32 : i32, i32
  }
}

</mosaic_0001>

<llo_original>
// kernel: tpu_custom_call.1
$region0: #{tpu_custom_call.1}
  #allocation0 [shape = 'u32[]', space=smem, size = 0x4, offset = 0x4, fixed_abs, tag = 'smem constant byte address 0x4 - core index']
  #allocation1 [shape = 'u32[72,128]{1,0:T(1,128)}', space=vmem, size = 0x9000, scoped, tag = 'internal scratch']
  #allocation2 [shape = 'f32[1,1]{1,0:T(1,128)S(1)}', space=vmem, size = 0x200, scoped, tag = 'scoped memory for tpu_custom_call.1']
  %s0 = inlined_call_operand.vmem [shape: f32[8,32], index: 0, kind: input, shape index: {}]
  %s1 = inlined_call_operand.vmem [shape: f32[32,16], index: 1, kind: input, shape index: {}]
  %s2 = inlined_call_operand.vmem [shape: f32[1,16], index: 2, kind: input, shape index: {}]
  %s3 = inlined_call_operand.vmem [shape: f32[1,16], index: 3, kind: input, shape index: {}]
  %s4 = inlined_call_operand.<no memory space> [shape: f32[1,1], index: 4, kind: input, shape index: {}]
  %s5 = inlined_call_operand.hbm [shape: f32[8,128], index: 5, kind: output, shape index: {}]
  %s6 = sld [smem:[#allocation0]]
  $region30: #{tpu_custom_call.1} parent=0
    _
  %s8 = ssub.s32 1, %s6
  %s9 = scalar_select 0, %s8, %s6
  %v10 = vstv %s4
  %11 = vst [vmem:[#allocation2] sm:$0x1] %v10
  $region1: #{tpu_custom_call.1} parent=0
    #allocation3 [shape = 'u8[4096]{0}', space=vmem, size = 0x1000, scoped, tag = 'output window, operand 0, single buffered']
    #allocation4 [shape = 's32[1]{0}', space=sflag, size = 0x4, scoped, tag = 'scoped memory for tpu_custom_call.1']
    %12 = vsyncpa [#allocation4], 0
    // Predicated region
    $region2: #{tpu_custom_call.1} parent=1 // pred_check
      _
    $region3: #{tpu_custom_call.1} parent=1 // pred_check_branch
      %14 = sbr.rel (0) target = $region5
    $region4: #{tpu_custom_call.1} parent=1 // pred_region
      _
    $region5: #{tpu_custom_call.1} parent=1 // pred_fallthru
      _
    // Predicated region
    $region6: #{tpu_custom_call.1} parent=1 // pred_check
      _
    $region7: #{tpu_custom_call.1} parent=1 // pred_check_branch
      %16 = sbr.rel (0) target = $region9
    $region8: #{tpu_custom_call.1} parent=1 // pred_region
      _
    $region9: #{tpu_custom_call.1} parent=1 // pred_fallthru
      _
    // Predicated region
    $region10: #{tpu_custom_call.1} parent=1 // pred_check
      _
    $region11: #{tpu_custom_call.1} parent=1 // pred_check_branch
      %18 = sbr.rel (0) target = $region13
    $region12: #{tpu_custom_call.1} parent=1 // pred_region
      _
    $region13: #{tpu_custom_call.1} parent=1 // pred_fallthru
      _
    // Predicated region
    $region14: #{tpu_custom_call.1} parent=1 // pred_check
      _
    $region15: #{tpu_custom_call.1} parent=1 // pred_check_branch
      %20 = sbr.rel (0) target = $region17
    $region16: #{tpu_custom_call.1} parent=1 // pred_region
      _
    $region17: #{tpu_custom_call.1} parent=1 // pred_fallthru
      _
    // Predicated region
    $region18: #{tpu_custom_call.1} parent=1 // pred_check
      _
    $region19: #{tpu_custom_call.1} parent=1 // pred_check_branch
      %22 = sbr.rel (0) target = $region21
    $region20: #{tpu_custom_call.1} parent=1 // pred_region
      _
    $region21: #{tpu_custom_call.1} parent=1 // pred_fallthru
      _
    %v23 = vld [vmem:[%s0] sm:$0xff]
    %v24 = vld [vmem:[%s1] sm:$0xff]
    %v25 = vld [vmem:[%s1 + $0x8] sm:$0xff]
    %v26 = vld [vmem:[%s1 + $0x10] sm:$0xff]
    %v27 = vld [vmem:[%s1 + $0x18] sm:$0xff]
    %v28 = vld [vmem:[%s2] sm:$0x1]
    %v30 = vperm.slane %v28, 0
    %vm32 = vcmask 261120
    %v34 = vsel %vm32, %v23, 0
    %36 = vmatpush.msra.mxu0 0.0
    %37 = vmatpush.msra.mxu0 0.0
    %38 = vmatpush.msra.mxu0 0.0
    %39 = vmatpush.msra.mxu0 0.0
    %40 = vmatpush.msra.mxu0 0.0
    %41 = vmatpush.msra.mxu0 0.0
    %42 = vmatpush.msra.mxu0 0.0
    %43 = vmatpush.msra.mxu0 0.0
    %44 = vmatpush.msra.mxu0 0.0
    %45 = vmatpush.msra.mxu0 0.0
    %46 = vmatpush.msra.mxu0 0.0
    %47 = vmatpush.msra.mxu0 0.0
    %48 = vmatpush.msra.mxu0 %v27
    %49 = vmatpush.msra.mxu0 %v26
    %50 = vmatpush.msra.mxu0 %v25
    %51 = vmatpush.msra.mxu0 %v24
    %52 = vmatmul.f32.gmra.mxu0 %v34
    %v53 = vpop.f32.mrf.mxu0
    %v54 = vadd.f32 %v30, %v53
    %55 = vdwg.mxu0
    %v56 = vmul.f32 %v54, 0.5
    %v57 = vmul.f32 %v54, 0.70710677
    %v58 = vmul.f32 %v57, %v57
    %v59 = vmin.f32 16.0, %v58
    %v60 = vmul.f32 %v59, 2.1237322e-06
    %v61 = vadd.f32 %v60, 0.00028619796
    %v62 = vmul.f32 %v59, %v61
    %v63 = vadd.f32 %v62, 0.0036580483
    %v64 = vmul.f32 %v59, %v63
    %v65 = vadd.f32 %v64, 0.05243302
    %v66 = vmul.f32 %v59, %v65
    %v67 = vadd.f32 %v66, 0.18741608
    %v68 = vmul.f32 %v59, %v67
    %v69 = vadd.f32 %v68, 1.1283791
    %v70 = vmul.f32 %v57, %v69
    %v71 = vmul.f32 %v59, 3.8918573e-05
    %v72 = vadd.f32 %v71, 0.001143296
    %v73 = vmul.f32 %v59, %v72
    %v74 = vadd.f32 %v73, 0.014752088
    %v75 = vmul.f32 %v59, %v74
    %v76 = vadd.f32 %v75, 0.112945676
    %v77 = vmul.f32 %v59, %v76
    %v78 = vadd.f32 %v77, 0.4994258
    %v79 = vmul.f32 %v59, %v78
    %v80 = vadd.f32 %v79, 1.0
    %v81 = vrcp.pop %v80
    %v82 = vmul.f32 %v80, %v81
    %v83 = vsub.f32 1.0, %v82
    %v84 = vmul.f32 %v81, %v83
    %v85 = vadd.f32 %v81, %v84
    %vm86 = vweird.f32 %v80
    %vm87 = vweird.f32 %v81
    %vm88 = vmor %vm86, %vm87
    %v89 = vsel %vm88, %v81, %v85
    %v90 = vand.u32 2147483647, %v80
    %vm91 = vcmp.eq.f32.partialorder %v90, 8.507059e+37
    %v92 = vand.u32 %v80, 2147483648
    %v93 = vor.u32 1.1754944e-38, %v92
    %v94 = vsel %vm91, %v93, %v89
    %v95 = vmul.f32 %v70, %v94
    %v96 = vmin.f32 %v95, 1.0
    %v97 = vmax.f32 %v96, -1.0
    %v98 = vadd.f32 %v97, 1.0
    %v99 = vmul.f32 %v56, %v98
    %vm100 = vcmask 130048
    %v101 = vsel %vm100, %v99, 0.0
    %102 = vadd.xlane.f32.xlu0 %v101
    %v103 = vpop.xlane.xlu0 %102
    %v104 = vrcp.pop 16.0
    %v105 = vmul.f32 16.0, %v104
    %v106 = vsub.f32 1.0, %v105
    %v107 = vmul.f32 %v104, %v106
    %v108 = vadd.f32 %v104, %v107
    %vm109 = vweird.f32 %v104
    %v110 = vsel %vm109, %v104, %v108
    %v111 = vmul.f32 %v103, %v110
    %v112 = vsub.f32 %v99, %v111
    %v113 = vmul.f32 %v112, %v112
    %v114 = vsel %vm100, %v113, 0.0
    %115 = vadd.xlane.f32.xlu0 %v114
    %v116 = vpop.xlane.xlu0 %115
    %v117 = vmul.f32 %v116, %v110
    %v118 = vadd.f32 %v117, 1e-05
    %v119 = vrsqrt.pop %v118
    %v120 = vmul.f32 %v119, %v118
    %v121 = vmul.f32 %v120, %v119
    %v122 = vmul.f32 0.5, %v121
    %v123 = vsub.f32 1.5, %v122
    %v124 = vmul.f32 %v119, %v123
    %vm125 = vweird.f32 %v118
    %vm126 = vweird.f32 %v119
    %vm127 = vmor %vm125, %vm126
    %v128 = vsel %vm127, %v119, %v124
    %v129 = vmul.f32 %v112, %v128
    %v130 = vld [vmem:[%s3] sm:$0x1]
    %v132 = vperm.slane %v130, 0
    %v134 = vmul.f32 %v129, %v132
    %v135 = vsel %vm100, %v134, 0.0
    %136 = vadd.xlane.f32.xlu0 %v135
    %v137 = vpop.xlane.xlu0 %136
    %v138 = vld [vmem:[#allocation2] sm:$0x1]
    %v140 = vperm.slane %v138, 0
    %v142 = vadd.f32 %v137, %v140
    %v143 = vsub.f32 0.0, %v142
    %v144 = vmul.f32 %v143, 1.442695
    %v145 = vpow.pop %v144
    %v146 = vadd.f32 %v145, 1.0
    %v147 = vrcp.pop %v146
    %v148 = vmul.f32 %v146, %v147
    %v149 = vsub.f32 1.0, %v148
    %v150 = vmul.f32 %v147, %v149
    %v151 = vadd.f32 %v147, %v150
    %vm152 = vweird.f32 %v146
    %vm153 = vweird.f32 %v147
    %vm154 = vmor %vm152, %vm153
    %v155 = vsel %vm154, %v147, %v151
    %v156 = vand.u32 2147483647, %v146
    %vm157 = vcmp.eq.f32.partialorder %v156, 8.507059e+37
    %v158 = vand.u32 %v146, 2147483648
    %v159 = vor.u32 1.1754944e-38, %v158
    %v160 = vsel %vm157, %v159, %v155
    %v161 = vmul.f32 1.0, %v160
    %v162 = vsub.f32 1.0, %v161
    %v163 = vlaneseq
    %v164 = vand.u32 %v163, 127
    %vm165 = vcmp.eq.s32.totalorder %v164, 0
    %vm166 = vcmp.eq.s32.totalorder %v164, 1
    %168 = vset.pattern.permute.xlu0 0
    %169 = vperm.xlu0 %168, %v162
    %v170 = vpop.permute.xlu0 %169
    %v172 = vsel %vm166, %v170, 0.0
    %174 = vset.pattern.permute.xlu0 0
    %175 = vperm.xlu0 %174, %v161
    %v176 = vpop.permute.xlu0 %175
    %v178 = vsel %vm165, %v176, %v172
    %179 = vst [vmem:[#allocation3] sm:$0xff] %v178
    // Predicated region
    $region22: #{tpu_custom_call.1} parent=1 // pred_check
      _
    $region23: #{tpu_custom_call.1} parent=1 // pred_check_branch
      %181 = sbr.rel (0) target = $region25
    $region24: #{tpu_custom_call.1} parent=1 // pred_region
      %183 = vsyncadd [#allocation4], 0
      %s185 = sshll.u32 [#allocation3], 4
      %s186 = int_to_ptr.vmem [resolvable:$true] %s185
      %s187 = sshll.u32 %s5, 4
      %s188 = int_to_ptr.hbm [resolvable:$true] %s187
      %190 = dma.vmem_to_hbm [thread:$0]  %s186, 128, %s188, [#allocation4]
    $region25: #{tpu_custom_call.1} parent=1 // pred_fallthru
      _
    // Predicated region
    $region26: #{tpu_custom_call.1} parent=1 // pred_check
      _
    $region27: #{tpu_custom_call.1} parent=1 // pred_check_branch
      %192 = sbr.rel (0) target = $region29
    $region28: #{tpu_custom_call.1} parent=1 // pred_region
      %194 = dma.done [#allocation4], 128
    $region29: #{tpu_custom_call.1} parent=1 // pred_fallthru
      _
    %195 = vsyncpa [#allocation4], 1

</llo_original>
